<compile_context>
chip_gen: v7x
topology: tpu7x:2x2x1
jax: 0.10.0
libtpu: 0.0.40
codegen_flags: <defaults>
</compile_context>

<pallas_src>
import functools

import jax
import jax.numpy as jnp
from jax.experimental import pallas as pl
from jax.experimental.pallas import tpu as pltpu


# ----------------------------- kernel helpers ------------------------------ #
def _masked_softmax(scores, lens):
    """scores: (Bt, S) f32, lens: (Bt, 1) i32 -> masked softmax over S (masked = 0)."""
    pos = jax.lax.broadcasted_iota(jnp.int32, scores.shape, 1)      # (Bt, S)
    mask = pos < lens                                               # (Bt, S) bool
    s = jnp.where(mask, scores, jnp.float32(-1e30))                 # finite fill (no inf-inf)
    m = jnp.max(s, axis=1, keepdims=True)
    e = jnp.where(mask, jnp.exp(s - m), jnp.float32(0.0))
    denom = jnp.sum(e, axis=1, keepdims=True)
    denom = jnp.where(denom > 0.0, denom, jnp.float32(1.0))         # fully-masked row guard
    return e * pl.reciprocal(denom, approx=False)                   # EUP reciprocal + VPU mul


def _pick_bt(B):
    """Batch-tile size: full B when small, else a multiple-of-8 divisor."""
    if B <= 8:
        return B
    for bt in (64, 32, 16, 8):
        if B % bt == 0:
            return bt
    return B


# ----------------------------- Pallas kernels ------------------------------ #
def _luong_kernel(*refs, use_wa):
    """method in ('dot', 'general').

    q: (Bt, H), ctx: (S, Bt, H) native layout, wa_t: (H, H) (general only),
    lens: (Bt, 1), out: (Bt, S).
    """
    if use_wa:
        q_ref, ctx_ref, wa_t_ref, lens_ref, out_ref = refs
    else:
        q_ref, ctx_ref, lens_ref, out_ref = refs

    q = q_ref[...].astype(jnp.float32)                              # (Bt, H)
    if use_wa:                                                      # 'general': MXU projection
        q = jnp.dot(q, wa_t_ref[...].astype(jnp.float32),
                    preferred_element_type=jnp.float32)
    ctx = ctx_ref[...].astype(jnp.float32)                          # (S, Bt, H)
    # batched matvec: scores_T[s, b] = sum_h ctx[s, b, h] * q[b, h]
    scores_t = jnp.sum(ctx * q[None, :, :], axis=-1)                # (S, Bt)  VPU mul + XLU reduce
    scores = scores_t.T                                             # (Bt, S)  lane-dense in S
    out_ref[...] = _masked_softmax(scores, lens_ref[...])


def _concat_kernel(*refs, use_cov):
    """method == 'concat' (Bahdanau), optional coverage.

    q: (Bt, H), ctx: (S, Bt, H) native layout, wah_t/was_t: (H, H) pre-transposed,
    bas: (1, H), v: (1, H), [cov_t: (S, Bt), wac_row: (1, H)], lens: (Bt, 1),
    out: (Bt, S).
    """
    if use_cov:
        (q_ref, ctx_ref, wah_t_ref, was_t_ref, bas_ref, v_ref,
         covt_ref, wac_row_ref, lens_ref, out_ref) = refs
    else:
        (q_ref, ctx_ref, wah_t_ref, was_t_ref, bas_ref, v_ref,
         lens_ref, out_ref) = refs

    S, Bt, H = ctx_ref.shape
    ctx2 = ctx_ref[...].astype(jnp.float32).reshape(S * Bt, H)      # merge leading dims
    ctx_p = jnp.dot(ctx2, wah_t_ref[...].astype(jnp.float32),
                    preferred_element_type=jnp.float32)             # W_a_h(context)  (MXU)
    q_p = jnp.dot(q_ref[...].astype(jnp.float32),
                  was_t_ref[...].astype(jnp.float32),
                  preferred_element_type=jnp.float32)
    q_p = q_p + bas_ref[...].astype(jnp.float32)                    # W_a_s(query), (Bt, H)

    pre = ctx_p.reshape(S, Bt, H) + q_p[None, :, :]                 # (S, Bt, H)
    if use_cov:
        cov = covt_ref[...].astype(jnp.float32)                     # (S, Bt)
        wac = wac_row_ref[...].astype(jnp.float32)[0]               # (H,)
        pre = pre + cov[:, :, None] * wac[None, None, :]
    t = jnp.tanh(pre)                                               # EUP
    v_row = v_ref[...].astype(jnp.float32)[0]                       # (H,)
    scores_t = jnp.sum(t * v_row[None, None, :], axis=-1)           # (S, Bt)
    out_ref[...] = _masked_softmax(scores_t.T, lens_ref[...])


# ------------------------------- wrappers ---------------------------------- #
def attention_luong(query, context_sbh, len_src, wa_weight=None, method='general'):
    """Equivalent of Attention.forward for method in ('dot', 'general')."""
    B, H = query.shape
    S = context_sbh.shape[0]
    lens = len_src.astype(jnp.int32).reshape(B, 1)
    Bt = _pick_bt(B)
    nb = B // Bt

    q_spec = pl.BlockSpec((Bt, H), lambda i: (i, 0))
    ctx_spec = pl.BlockSpec((S, Bt, H), lambda i: (0, i, 0))        # native (S, B, H)
    lens_spec = pl.BlockSpec((Bt, 1), lambda i: (i, 0))
    out_spec = pl.BlockSpec((Bt, S), lambda i: (i, 0))

    use_wa = (method == 'general')
    if use_wa:
        wa_t = wa_weight.T
        w_spec = pl.BlockSpec((H, H), lambda i: (0, 0))             # weight stays resident
        in_specs = [q_spec, ctx_spec, w_spec, lens_spec]
        args = (query, context_sbh, wa_t, lens)
    else:
        in_specs = [q_spec, ctx_spec, lens_spec]
        args = (query, context_sbh, lens)

    kernel = functools.partial(_luong_kernel, use_wa=use_wa)
    return pl.pallas_call(
        kernel,
        out_shape=jax.ShapeDtypeStruct((B, S), jnp.float32),
        grid=(nb,),
        in_specs=in_specs,
        out_specs=out_spec,
        compiler_params=pltpu.CompilerParams(dimension_semantics=("parallel",)),
    )(*args)


def attention_concat(query, context_sbh, len_src, wah_w, was_w, was_b, v_w,
                     coverage=None, wac_w=None):
    """Equivalent of Attention.forward for method == 'concat'."""
    B, H = query.shape
    S = context_sbh.shape[0]
    lens = len_src.astype(jnp.int32).reshape(B, 1)
    Bt = _pick_bt(B)
    nb = B // Bt

    wah_t = wah_w.T                                                 # (H, H)
    was_t = was_w.T                                                 # (H, H)
    bas = was_b.reshape(1, H)
    v = v_w.reshape(1, H)                                           # nn.Linear(H,1).weight is (1,H)

    q_spec = pl.BlockSpec((Bt, H), lambda i: (i, 0))
    ctx_spec = pl.BlockSpec((S, Bt, H), lambda i: (0, i, 0))        # native (S, B, H)
    w_spec = pl.BlockSpec((H, H), lambda i: (0, 0))
    row_spec = pl.BlockSpec((1, H), lambda i: (0, 0))
    lens_spec = pl.BlockSpec((Bt, 1), lambda i: (i, 0))
    out_spec = pl.BlockSpec((Bt, S), lambda i: (i, 0))

    use_cov = coverage is not None
    if use_cov:
        cov_t = jnp.transpose(coverage, (1, 0))                     # (S, B) -- tiny
        wac_row = wac_w.reshape(1, H)                               # (H,1) -> (1,H)
        covt_spec = pl.BlockSpec((S, Bt), lambda i: (0, i))
        in_specs = [q_spec, ctx_spec, w_spec, w_spec, row_spec, row_spec,
                    covt_spec, row_spec, lens_spec]
        args = (query, context_sbh, wah_t, was_t, bas, v, cov_t, wac_row, lens)
    else:
        in_specs = [q_spec, ctx_spec, w_spec, w_spec, row_spec, row_spec, lens_spec]
        args = (query, context_sbh, wah_t, was_t, bas, v, lens)

    kernel = functools.partial(_concat_kernel, use_cov=use_cov)
    return pl.pallas_call(
        kernel,
        out_shape=jax.ShapeDtypeStruct((B, S), jnp.float32),
        grid=(nb,),
        in_specs=in_specs,
        out_specs=out_spec,
        compiler_params=pltpu.CompilerParams(dimension_semantics=("parallel",)),
    )(*args)


# ------------------------ pure-JAX reference (checks) ----------------------- #
def _ref_masked_softmax(scores, lens, S):
    pos = jnp.arange(S)[None, :]
    mask = pos < lens[:, None]
    scores = jnp.where(mask, scores, -jnp.inf)
    return jax.nn.softmax(scores, axis=1)


def ref_luong(query, context_sbh, lens, wa_w, method):
    S = context_sbh.shape[0]
    q = query @ wa_w.T if method == 'general' else query
    ctx = jnp.transpose(context_sbh, (1, 2, 0))                     # (B, H, S)
    scores = jnp.einsum('bh,bhs->bs', q, ctx)
    return _ref_masked_softmax(scores, lens, S)


def ref_concat(query, context_sbh, lens, wah_w, was_w, was_b, v_w, coverage, wac_w):
    B, H = query.shape
    S = context_sbh.shape[0]
    ctx = jnp.transpose(context_sbh, (1, 0, 2)).reshape(-1, H)
    ctx = ctx @ wah_w.T
    q = query @ was_w.T + was_b
    q = jnp.broadcast_to(q[:, None, :], (B, S, H)).reshape(-1, H)
    scores = ctx + q
    if coverage is not None:
        scores = scores + coverage.reshape(-1, 1) @ wac_w.T
    scores = jnp.tanh(scores) @ v_w.T                               # (B*S, 1)
    scores = scores.reshape(-1, S)
    return _ref_masked_softmax(scores, lens, S)


# ----------------------------------- main ----------------------------------- #
if __name__ == "__main__":
    B, S, H = 2, 8, 32
    key = jax.random.PRNGKey(0)
    ks = jax.random.split(key, 8)

    query = jax.random.normal(ks[0], (B, H), jnp.float32)
    context = jax.random.normal(ks[1], (S, B, H), jnp.float32)          # (S, B, H), PyTorch conv.
    len_src = jnp.array([5, 8], jnp.int32)                              # (B,)
    coverage = jax.random.uniform(ks[2], (B, S), jnp.float32)

    bound = 1.0 / (H ** 0.5)
    wa_w = jax.random.uniform(ks[3], (H, H), jnp.float32, -bound, bound)    # W_a.weight
    wah_w = jax.random.uniform(ks[4], (H, H), jnp.float32, -bound, bound)   # W_a_h.weight
    was_w = jax.random.uniform(ks[5], (H, H), jnp.float32, -bound, bound)   # W_a_s.weight
    was_b = jax.random.uniform(ks[6], (H,), jnp.float32, -bound, bound)     # W_a_s.bias
    v_w = jax.random.uniform(ks[7], (1, H), jnp.float32, -bound, bound)     # v.weight
    wac_w = jax.random.uniform(jax.random.PRNGKey(1), (H, 1), jnp.float32,
                               -1.0, 1.0)                                   # W_a_c.weight

    # method == 'general'
    out_gen = attention_luong(query, context, len_src, wa_w, method='general')
    out_gen = jax.block_until_ready(out_gen)
    ref_gen = ref_luong(query, context, len_src, wa_w, 'general')
    assert jnp.allclose(out_gen, ref_gen, rtol=1e-4, atol=1e-5), "general mismatch"

    # method == 'dot'
    out_dot = attention_luong(query, context, len_src, None, method='dot')
    out_dot = jax.block_until_ready(out_dot)
    ref_dot = ref_luong(query, context, len_src, None, 'dot')
    assert jnp.allclose(out_dot, ref_dot, rtol=1e-4, atol=1e-5), "dot mismatch"

    # method == 'concat' with coverage
    out_cc = attention_concat(query, context, len_src, wah_w, was_w, was_b, v_w,
                              coverage=coverage, wac_w=wac_w)
    out_cc = jax.block_until_ready(out_cc)
    ref_cc = ref_concat(query, context, len_src, wah_w, was_w, was_b, v_w,
                        coverage, wac_w)
    assert jnp.allclose(out_cc, ref_cc, rtol=1e-4, atol=1e-5), "concat mismatch"

    # method == 'concat' without coverage (specialized no-coverage kernel)
    out_nc = attention_concat(query, context, len_src, wah_w, was_w, was_b, v_w)
    out_nc = jax.block_until_ready(out_nc)
    ref_nc = ref_concat(query, context, len_src, wah_w, was_w, was_b, v_w,
                        None, None)
    assert jnp.allclose(out_nc, ref_nc, rtol=1e-4, atol=1e-5), "concat(no-cov) mismatch"

    # sanity: row softmax sums to 1 and masked tail of row 0 is exactly 0
    assert jnp.allclose(out_gen.sum(axis=1), 1.0, atol=1e-5)
    assert float(jnp.abs(out_gen[0, 5:]).max()) == 0.0
    assert float(jnp.abs(out_cc[0, 5:]).max()) == 0.0

    print("KERNEL_OK")
</pallas_src>

<mosaic_0001>
module attributes {stable_mosaic.version = 11 : i64} {
  func.func @_luong_kernel(%arg0: i32, %arg1: memref<2x32xf32, #tpu.memory_space<vmem>>, %arg2: memref<8x2x32xf32, #tpu.memory_space<vmem>>, %arg3: memref<32x32xf32, #tpu.memory_space<vmem>>, %arg4: memref<2x1xi32, #tpu.memory_space<vmem>>, %arg5: memref<2x8xf32, #tpu.memory_space<vmem>>) attributes {dimension_semantics = [#tpu.dimension_semantics<parallel>], iteration_bounds = array<i64: 1>, scalar_prefetch = 0 : i64, scratch_operands = 0 : i64, tpu.core_type = #tpu.core_type<tc>, window_params = [{transform_indices = @transform_0, window_bounds = array<i64: 2, 32>}, {transform_indices = @transform_1, window_bounds = array<i64: 8, 2, 32>}, {pipeline_mode = #tpu.pipeline_mode<synchronous>, transform_indices = @transform_2, window_bounds = array<i64: 32, 32>}, {transform_indices = @transform_3, window_bounds = array<i64: 2, 1>}, {transform_indices = @transform_4, window_bounds = array<i64: 2, 8>}]} {
    %c0 = arith.constant 0 : index
    %c0_0 = arith.constant 0 : index
    %0 = vector.load %arg1[%c0, %c0_0] : memref<2x32xf32, #tpu.memory_space<vmem>>, vector<2x32xf32>
    %c0_1 = arith.constant 0 : index
    %c0_2 = arith.constant 0 : index
    %1 = vector.load %arg3[%c0_1, %c0_2] : memref<32x32xf32, #tpu.memory_space<vmem>>, vector<32x32xf32>
    %cst = arith.constant dense<0.000000e+00> : vector<2x32xf32>
    %2 = tpu.matmul %0, %1, %cst {dimension_numbers = #tpu.dot_dimension_numbers<[1], [0], [0], [1], [0, 0, 1, 1], [], []>} : vector<2x32xf32>, vector<32x32xf32>, vector<2x32xf32> -> vector<2x32xf32>
    %c0_3 = arith.constant 0 : index
    %c0_4 = arith.constant 0 : index
    %c0_5 = arith.constant 0 : index
    %3 = vector.load %arg2[%c0_3, %c0_4, %c0_5] : memref<8x2x32xf32, #tpu.memory_space<vmem>>, vector<8x2x32xf32>
    %4 = vector.shape_cast %2 : vector<2x32xf32> to vector<1x2x32xf32>
    %5 = vector.broadcast %4 : vector<1x2x32xf32> to vector<8x2x32xf32>
    %6 = arith.mulf %3, %5 : vector<8x2x32xf32>
    %cst_6 = arith.constant dense<0.000000e+00> : vector<8x2xf32>
    %7 = vector.multi_reduction <add>, %6, %cst_6 [2] : vector<8x2x32xf32> to vector<8x2xf32>
    %8 = tpu.transpose %7, [1, 0] : vector<8x2xf32> -> vector<2x8xf32>
    %c0_7 = arith.constant 0 : index
    %c0_8 = arith.constant 0 : index
    %9 = vector.load %arg4[%c0_7, %c0_8] : memref<2x1xi32, #tpu.memory_space<vmem>>, vector<2x1xi32>
    %10 = tpu.iota {dimensions = array<i32: 1>} : vector<2x8xi32>
    %11 = vector.broadcast %9 : vector<2x1xi32> to vector<2x8xi32>
    %12 = arith.cmpi slt, %10, %11 : vector<2x8xi32>
    %cst_9 = arith.constant -1.000000e+30 : f32
    %13 = vector.broadcast %cst_9 : f32 to vector<2x8xf32>
    %14 = arith.select %12, %8, %13 : vector<2x8xi1>, vector<2x8xf32>
    %cst_10 = arith.constant dense<0xFF800000> : vector<2xf32>
    %15 = vector.multi_reduction <maximumf>, %14, %cst_10 [1] : vector<2x8xf32> to vector<2xf32>
    %16 = vector.shape_cast %15 : vector<2xf32> to vector<2x1xf32>
    %17 = vector.broadcast %16 : vector<2x1xf32> to vector<2x8xf32>
    %18 = arith.subf %14, %17 : vector<2x8xf32>
    %19 = math.exp %18 : vector<2x8xf32>
    %cst_11 = arith.constant 0.000000e+00 : f32
    %20 = vector.broadcast %cst_11 : f32 to vector<2x8xf32>
    %21 = arith.select %12, %19, %20 : vector<2x8xi1>, vector<2x8xf32>
    %cst_12 = arith.constant dense<0.000000e+00> : vector<2xf32>
    %22 = vector.multi_reduction <add>, %21, %cst_12 [1] : vector<2x8xf32> to vector<2xf32>
    %23 = vector.shape_cast %22 : vector<2xf32> to vector<2x1xf32>
    %cst_13 = arith.constant 0.000000e+00 : f32
    %24 = vector.broadcast %cst_13 : f32 to vector<2x1xf32>
    %25 = arith.cmpf ogt, %23, %24 : vector<2x1xf32>
    %cst_14 = arith.constant 1.000000e+00 : f32
    %26 = vector.broadcast %cst_14 : f32 to vector<2x1xf32>
    %27 = arith.select %25, %23, %26 : vector<2x1xi1>, vector<2x1xf32>
    %28 = tpu.reciprocal %27 : vector<2x1xf32> -> vector<2x1xf32>
    %29 = vector.broadcast %28 : vector<2x1xf32> to vector<2x8xf32>
    %30 = arith.mulf %21, %29 : vector<2x8xf32>
    %c0_15 = arith.constant 0 : index
    %c0_16 = arith.constant 0 : index
    %31 = vector.load %arg5[%c0_15, %c0_16] : memref<2x8xf32, #tpu.memory_space<vmem>>, vector<2x8xf32>
    tpu.vector_store %arg5[%c0_15, %c0_16], %30 {strides = array<i32>} : memref<2x8xf32, #tpu.memory_space<vmem>>, vector<2x8xf32>,
    return
  }
  func.func @transform_0(%arg0: i32) -> (i32, i32) {
    %c0_i32 = arith.constant 0 : i32
    %c0_i32_0 = arith.constant 0 : i32
    return %arg0, %c0_i32 : i32, i32
  }
  func.func @transform_1(%arg0: i32) -> (i32, i32, i32) {
    %c0_i32 = arith.constant 0 : i32
    %c0_i32_0 = arith.constant 0 : i32
    %c0_i32_1 = arith.constant 0 : i32
    return %c0_i32, %arg0, %c0_i32_0 : i32, i32, i32
  }
  func.func @transform_2(%arg0: i32) -> (i32, i32) {
    %c0_i32 = arith.constant 0 : i32
    %c0_i32_0 = arith.constant 0 : i32
    %c0_i32_1 = arith.constant 0 : i32
    return %c0_i32, %c0_i32_0 : i32, i32
  }
  func.func @transform_3(%arg0: i32) -> (i32, i32) {
    %c0_i32 = arith.constant 0 : i32
    %c0_i32_0 = arith.constant 0 : i32
    return %arg0, %c0_i32 : i32, i32
  }
  func.func @transform_4(%arg0: i32) -> (i32, i32) {
    %c0_i32 = arith.constant 0 : i32
    %c0_i32_0 = arith.constant 0 : i32
    return %arg0, %c0_i32 : i32, i32
  }
}

</mosaic_0001>

<llo_original>
// kernel: tpu_custom_call.1
$region0: #{tpu_custom_call.1}
  #allocation0 [shape = 'u32[]', space=smem, size = 0x4, offset = 0x4, fixed_abs, tag = 'smem constant byte address 0x4 - core index']
  #allocation1 [shape = 'u32[144,128]{1,0:T(1,128)}', space=vmem, size = 0x12000, scoped, tag = 'internal scratch']
  %s0 = inlined_call_operand.vmem [shape: f32[2,32], index: 0, kind: input, shape index: {}]
  %s1 = inlined_call_operand.hbm [shape: f32[8,2,32], index: 1, kind: input, shape index: {}]
  %s2 = inlined_call_operand.hbm [shape: f32[32,32], index: 2, kind: input, shape index: {}]
  %s3 = inlined_call_operand.vmem [shape: s32[2,1], index: 3, kind: input, shape index: {}]
  %s4 = inlined_call_operand.hbm [shape: f32[2,8], index: 4, kind: output, shape index: {}]
  %s5 = sld [smem:[#allocation0]]
  $region34: #{tpu_custom_call.1} parent=0
    _
  %s7 = ssub.s32 1, %s5
  %s8 = scalar_select 0, %s7, %s5
  $region1: #{tpu_custom_call.1} parent=0
    #allocation2 [shape = 'u8[8192]{0}', space=vmem, size = 0x2000, scoped, tag = 'input window, operand 1, single buffered']
    #allocation3 [shape = 's32[1]{0}', space=sflag, size = 0x4, scoped, tag = 'scoped memory for tpu_custom_call.1']
    #allocation4 [shape = 's32[1]{0}', space=sflag, size = 0x4, scoped, tag = 'scoped memory for tpu_custom_call.1']
    #allocation5 [shape = 'u8[16384]{0}', space=vmem, size = 0x4000, scoped, tag = 'input window, operand 2, single buffered']
    #allocation6 [shape = 's32[1]{0}', space=sflag, size = 0x4, scoped, tag = 'scoped memory for tpu_custom_call.1']
    #allocation7 [shape = 'u8[1024]{0}', space=vmem, size = 0x400, scoped, tag = 'output window, operand 0, single buffered']
    %9 = vsyncpa [#allocation3], 0
    %10 = vsyncpa [#allocation6], 0
    %11 = vsyncpa [#allocation4], 0
    // Predicated region
    $region2: #{tpu_custom_call.1} parent=1 // pred_check
      _
    $region3: #{tpu_custom_call.1} parent=1 // pred_check_branch
      %13 = sbr.rel (0) target = $region5
    $region4: #{tpu_custom_call.1} parent=1 // pred_region
      _
    $region5: #{tpu_custom_call.1} parent=1 // pred_fallthru
      _
    // Predicated region
    $region6: #{tpu_custom_call.1} parent=1 // pred_check
      _
    $region7: #{tpu_custom_call.1} parent=1 // pred_check_branch
      %15 = sbr.rel (0) target = $region9
    $region8: #{tpu_custom_call.1} parent=1 // pred_region
      %s17 = ssub.s32 256, 256
      %18 = vsyncadd [#allocation3], %s17
      %s19 = sshll.u32 [#allocation2], 4
      %s20 = int_to_ptr.vmem [resolvable:$true] %s19
      %25 = dma.hbm_to_vmem [thread:$0]  %s1, 256, %s20, [#allocation3], 32, 32, 2
    $region9: #{tpu_custom_call.1} parent=1 // pred_fallthru
      _
    // Predicated region
    $region10: #{tpu_custom_call.1} parent=1 // pred_check
      _
    $region11: #{tpu_custom_call.1} parent=1 // pred_check_branch
      %27 = sbr.rel (0) target = $region13
    $region12: #{tpu_custom_call.1} parent=1 // pred_region
      %s29 = ssub.s32 512, 512
      %30 = vsyncadd [#allocation6], %s29
      %s31 = sshll.u32 [#allocation5], 4
      %s32 = int_to_ptr.vmem [resolvable:$true] %s31
      %37 = dma.hbm_to_vmem [thread:$0]  %s2, 512, %s32, [#allocation6], 128, 128, 8
    $region13: #{tpu_custom_call.1} parent=1 // pred_fallthru
      _
    // Predicated region
    $region14: #{tpu_custom_call.1} parent=1 // pred_check
      _
    $region15: #{tpu_custom_call.1} parent=1 // pred_check_branch
      %39 = sbr.rel (0) target = $region17
    $region16: #{tpu_custom_call.1} parent=1 // pred_region
      _
    $region17: #{tpu_custom_call.1} parent=1 // pred_fallthru
      _
    // Predicated region
    $region18: #{tpu_custom_call.1} parent=1 // pred_check
      _
    $region19: #{tpu_custom_call.1} parent=1 // pred_check_branch
      %41 = sbr.rel (0) target = $region21
    $region20: #{tpu_custom_call.1} parent=1 // pred_region
      %42 = dma.done [#allocation3], 256
    $region21: #{tpu_custom_call.1} parent=1 // pred_fallthru
      _
    // Predicated region
    $region22: #{tpu_custom_call.1} parent=1 // pred_check
      _
    $region23: #{tpu_custom_call.1} parent=1 // pred_check_branch
      %44 = sbr.rel (0) target = $region25
    $region24: #{tpu_custom_call.1} parent=1 // pred_region
      %45 = dma.done [#allocation6], 512
    $region25: #{tpu_custom_call.1} parent=1 // pred_fallthru
      _
    %v46 = vld [vmem:[%s0] sm:$0x3]
    %v47 = vld [vmem:[#allocation5] sm:$0xff]
    %v48 = vld [vmem:[#allocation5 + $0x8] sm:$0xff]
    %v49 = vld [vmem:[#allocation5 + $0x10] sm:$0xff]
    %v50 = vld [vmem:[#allocation5 + $0x18] sm:$0xff]
    %vm51 = vcmask 261120
    %v53 = vsel %vm51, %v46, 0
    %55 = vmatprep.subr.mxu0 0.0
    %56 = vmatpush1.msra.mxu0 %v47
    %57 = vmatprep.subr.mxu0 0.0
    %58 = vmatpush1.msra.mxu0 %v48
    %59 = vmatprep.subr.mxu0 0.0
    %60 = vmatpush1.msra.mxu0 %v49
    %61 = vmatprep.subr.mxu0 0.0
    %62 = vmatpush1.msra.mxu0 %v50
    %63 = vmatprep.subr.mxu0 0.0
    %64 = vmatpush1.msra.mxu0 0.0
    %65 = vmatprep.subr.mxu0 0.0
    %66 = vmatpush1.msra.mxu0 0.0
    %67 = vmatprep.subr.mxu0 0.0
    %68 = vmatpush1.msra.mxu0 0.0
    %69 = vmatprep.subr.mxu0 0.0
    %70 = vmatpush1.msra.mxu0 0.0
    %71 = vmatprep.subr.mxu0 0.0
    %72 = vmatpush1.msra.mxu0 0.0
    %73 = vmatprep.subr.mxu0 0.0
    %74 = vmatpush1.msra.mxu0 0.0
    %75 = vmatprep.subr.mxu0 0.0
    %76 = vmatpush1.msra.mxu0 0.0
    %77 = vmatprep.subr.mxu0 0.0
    %78 = vmatpush1.msra.mxu0 0.0
    %79 = vmatprep.subr.mxu0 0.0
    %80 = vmatpush1.msra.mxu0 0.0
    %81 = vmatprep.subr.mxu0 0.0
    %82 = vmatpush1.msra.mxu0 0.0
    %83 = vmatprep.subr.mxu0 0.0
    %84 = vmatpush1.msra.mxu0 0.0
    %85 = vmatprep.subr.mxu0 0.0
    %86 = vmatpush1.msra.mxu0 0.0
    %87 = vmatprep.subr.mxu0 0.0
    %88 = vmatpush1.msra.mxu0 0.0
    %89 = vmatprep.subr.mxu0 0.0
    %90 = vmatpush1.msra.mxu0 0.0
    %91 = vmatprep.subr.mxu0 0.0
    %92 = vmatpush1.msra.mxu0 0.0
    %93 = vmatprep.subr.mxu0 0.0
    %94 = vmatpush1.msra.mxu0 0.0
    %95 = vmatprep.subr.mxu0 0.0
    %96 = vmatpush1.msra.mxu0 0.0
    %97 = vmatprep.subr.mxu0 0.0
    %98 = vmatpush1.msra.mxu0 0.0
    %99 = vmatprep.subr.mxu0 0.0
    %100 = vmatpush1.msra.mxu0 0.0
    %101 = vmatprep.subr.mxu0 0.0
    %102 = vmatpush1.msra.mxu0 0.0
    %103 = vmatprep.subr.mxu0 0.0
    %104 = vmatpush1.msra.mxu0 0.0
    %105 = vmatprep.subr.mxu0 0.0
    %106 = vmatpush1.msra.mxu0 0.0
    %107 = vmatprep.subr.mxu0 0.0
    %108 = vmatpush1.msra.mxu0 0.0
    %109 = vmatprep.subr.mxu0 0.0
    %110 = vmatpush1.msra.mxu0 0.0
    %111 = vmatprep.subr.mxu0 0.0
    %112 = vmatpush1.msra.mxu0 0.0
    %113 = vmatprep.subr.mxu0 0.0
    %114 = vmatpush1.msra.mxu0 0.0
    %115 = vmatprep.subr.mxu0 0.0
    %116 = vmatpush1.msra.mxu0 0.0
    %117 = vmatprep.subr.mxu0 0.0
    %118 = vmatpush1.msra.mxu0 0.0
    %119 = vmatprep.mubr.f32.mxu0 0.0
    %120 = vmatmul.mubr.f32.gmra.mrb[0].mxu0 %v53
    %v121 = vpop.f32.mrb[0].mxu0
    %v122 = vadd.f32 0.0, %v121
    %v123 = vpop.f32.mrb[0].mxu0
    %124 = vdwg.mxu0
    %v125 = vld [vmem:[#allocation2] sm:$0x3]
    %v126 = vld [vmem:[#allocation2 + $0x2] sm:$0x3]
    %v127 = vld [vmem:[#allocation2 + $0x4] sm:$0x3]
    %v128 = vld [vmem:[#allocation2 + $0x6] sm:$0x3]
    %v129 = vld [vmem:[#allocation2 + $0x8] sm:$0x3]
    %v130 = vld [vmem:[#allocation2 + $0xa] sm:$0x3]
    %v131 = vld [vmem:[#allocation2 + $0xc] sm:$0x3]
    %v132 = vld [vmem:[#allocation2 + $0xe] sm:$0x3]
    %v133 = vmul.f32 %v125, %v122
    %v134 = vmul.f32 %v126, %v122
    %v135 = vmul.f32 %v127, %v122
    %v136 = vmul.f32 %v128, %v122
    %v137 = vmul.f32 %v129, %v122
    %v138 = vmul.f32 %v130, %v122
    %v139 = vmul.f32 %v131, %v122
    %v140 = vmul.f32 %v132, %v122
    %vm141 = vcmask 254976
    %v142 = vsel %vm141, %v133, 0.0
    %143 = vadd.xlane.f32.xlu0 %v142
    %v144 = vpop.xlane.xlu0 %143
    %v145 = vsel %vm141, %v134, 0.0
    %146 = vadd.xlane.f32.xlu0 %v145
    %v147 = vpop.xlane.xlu0 %146
    %v148 = vsel %vm141, %v135, 0.0
    %149 = vadd.xlane.f32.xlu0 %v148
    %v150 = vpop.xlane.xlu0 %149
    %v151 = vsel %vm141, %v136, 0.0
    %152 = vadd.xlane.f32.xlu0 %v151
    %v153 = vpop.xlane.xlu0 %152
    %v154 = vsel %vm141, %v137, 0.0
    %155 = vadd.xlane.f32.xlu0 %v154
    %v156 = vpop.xlane.xlu0 %155
    %v157 = vsel %vm141, %v138, 0.0
    %158 = vadd.xlane.f32.xlu0 %v157
    %v159 = vpop.xlane.xlu0 %158
    %v160 = vsel %vm141, %v139, 0.0
    %161 = vadd.xlane.f32.xlu0 %v160
    %v162 = vpop.xlane.xlu0 %161
    %v163 = vsel %vm141, %v140, 0.0
    %164 = vadd.xlane.f32.xlu0 %v163
    %v165 = vpop.xlane.xlu0 %164
    %v174 = vlaneseq
    %v175 = vand.u32 %v174, 127
    %v176 = vlaneseq
    %v177 = vshrl.u32 %v176, 7
    %v178 = vsub.s32 %v175, %v177
    %v179 = vrot.slane %v144, %v178
    %v180 = vlaneseq
    %v181 = vshrl.u32 %v180, 7
    %v182 = vsub.s32 %v175, %v181
    %v183 = vrot.slane %v147, %v182
    %v184 = vlaneseq
    %v185 = vshrl.u32 %v184, 7
    %v186 = vsub.s32 %v175, %v185
    %v187 = vrot.slane %v150, %v186
    %v188 = vlaneseq
    %v189 = vshrl.u32 %v188, 7
    %v190 = vsub.s32 %v175, %v189
    %v191 = vrot.slane %v153, %v190
    %v192 = vlaneseq
    %v193 = vshrl.u32 %v192, 7
    %v194 = vsub.s32 %v175, %v193
    %v195 = vrot.slane %v156, %v194
    %v196 = vlaneseq
    %v197 = vshrl.u32 %v196, 7
    %v198 = vsub.s32 %v175, %v197
    %v199 = vrot.slane %v159, %v198
    %v200 = vlaneseq
    %v201 = vshrl.u32 %v200, 7
    %v202 = vsub.s32 %v175, %v201
    %v203 = vrot.slane %v162, %v202
    %v204 = vlaneseq
    %v205 = vshrl.u32 %v204, 7
    %v206 = vsub.s32 %v175, %v205
    %v207 = vrot.slane %v165, %v206
    %vm208 = vcmask 1041409
    %v209 = vsel %vm208, %v183, %v179
    %vm210 = vcmask 1042434
    %v211 = vsel %vm210, %v187, %v209
    %vm212 = vcmask 1043459
    %v213 = vsel %vm212, %v191, %v211
    %vm214 = vcmask 1044484
    %v215 = vsel %vm214, %v195, %v213
    %vm216 = vcmask 1045509
    %v217 = vsel %vm216, %v199, %v215
    %vm218 = vcmask 1046534
    %v219 = vsel %vm218, %v203, %v217
    %vm220 = vcmask 1047559
    %v221 = vsel %vm220, %v207, %v219
    %223 = vxpose.xlu0.b32.start [1/16] %v221, 128
    %224 = vxpose.xlu0.b32.cont [2/16] 0.0, 128
    %225 = vxpose.xlu0.b32.cont [3/16] 0.0, 128
    %226 = vxpose.xlu0.b32.cont [4/16] 0.0, 128
    %227 = vxpose.xlu0.b32.cont [5/16] 0.0, 128
    %228 = vxpose.xlu0.b32.cont [6/16] 0.0, 128
    %229 = vxpose.xlu0.b32.cont [7/16] 0.0, 128
    %230 = vxpose.xlu0.b32.cont [8/16] 0.0, 128
    %231 = vxpose.xlu0.b32.cont [9/16] 0.0, 128
    %232 = vxpose.xlu0.b32.cont [10/16] 0.0, 128
    %233 = vxpose.xlu0.b32.cont [11/16] 0.0, 128
    %234 = vxpose.xlu0.b32.cont [12/16] 0.0, 128
    %235 = vxpose.xlu0.b32.cont [13/16] 0.0, 128
    %236 = vxpose.xlu0.b32.cont [14/16] 0.0, 128
    %237 = vxpose.xlu0.b32.cont [15/16] 0.0, 128
    %238 = vxpose.xlu0.b32.end [16/16] 0.0, 128
    %v239 = vpop.trf.xlu0
    %v240 = vpop.trf.xlu0
    %v241 = vpop.trf.xlu0
    %v242 = vpop.trf.xlu0
    %v243 = vpop.trf.xlu0
    %v244 = vpop.trf.xlu0
    %v245 = vpop.trf.xlu0
    %v246 = vpop.trf.xlu0
    %v247 = vpop.trf.xlu0
    %v248 = vpop.trf.xlu0
    %v249 = vpop.trf.xlu0
    %v250 = vpop.trf.xlu0
    %v251 = vpop.trf.xlu0
    %v252 = vpop.trf.xlu0
    %v253 = vpop.trf.xlu0
    %v254 = vpop.trf.xlu0
    %v255 = vld [vmem:[%s3] sm:$0x3]
    %256 = vset.pattern.permute.xlu0 0
    %257 = vperm.xlu0 %256, %v255
    %v258 = vpop.permute.xlu0 %257
    %vm259 = vcmp.lt.s32.totalorder %v175, %v258
    %v260 = vsel %vm259, %v239, -1e+30
    %vm261 = vcmask 58368
    %v262 = vsel %vm261, %v260, -inf
    %263 = vmax.xlane.f32.xlu0 %v262
    %v264 = vpop.xlane.xlu0 %263
    %v265 = vsub.f32 %v260, %v264
    %v266 = vmul.f32 %v265, 1.442695
    %v267 = vpow.pop %v266
    %v268 = vsel %vm259, %v267, 0.0
    %v269 = vsel %vm261, %v268, 0.0
    %270 = vadd.xlane.f32.xlu0 %v269
    %v271 = vpop.xlane.xlu0 %270
    %vm272 = vcmp.gt.f32.partialorder %v271, 0.0
    %v273 = vsel %vm272, %v271, 1.0
    %v274 = vrcp.pop %v273
    %v275 = vmul.f32 %v268, %v274
    %276 = vst.msk [vmem:[#allocation7] sm:$0x3] %vm261, %v275
    // Predicated region
    $region26: #{tpu_custom_call.1} parent=1 // pred_check
      _
    $region27: #{tpu_custom_call.1} parent=1 // pred_check_branch
      %278 = sbr.rel (0) target = $region29
    $region28: #{tpu_custom_call.1} parent=1 // pred_region
      %s280 = ssub.s32 32, 32
      %281 = vsyncadd [#allocation4], %s280
      %s283 = sshll.u32 [#allocation7], 4
      %s284 = int_to_ptr.vmem [resolvable:$true] %s283
      %286 = dma.vmem_to_hbm [thread:$0]  %s284, 32, %s4, [#allocation4]
    $region29: #{tpu_custom_call.1} parent=1 // pred_fallthru
      _
    // Predicated region
    $region30: #{tpu_custom_call.1} parent=1 // pred_check
      _
    $region31: #{tpu_custom_call.1} parent=1 // pred_check_branch
      %288 = sbr.rel (0) target = $region33
    $region32: #{tpu_custom_call.1} parent=1 // pred_region
      %289 = dma.done [#allocation4], 32
    $region33: #{tpu_custom_call.1} parent=1 // pred_fallthru
      _
    %290 = vsyncpa [#allocation3], 1
    %291 = vsyncpa [#allocation6], 1
    %292 = vsyncpa [#allocation4], 1

</llo_original>
